<compile_context>
chip_gen: v7x
topology: tpu7x:2x2x1
jax: 0.10.0
libtpu: 0.0.40
codegen_flags: <defaults>
</compile_context>

<pallas_src>
import numpy as np

import jax
import jax.numpy as jnp
from jax.experimental import pallas as pl
from jax.experimental.pallas import tpu as pltpu


def _postprocess_kernel(logits_ref,   # VMEM [B, Q, Cn+Co]  (nvi | obj logits)
                        boxes_ref,    # VMEM [2B, 4, Q]     rows = (cx, cy, w, h)
                        scale_ref,    # VMEM [2B, 2, 1]     rows = (img_w, img_h)
                        scores_ref,   # VMEM [B, Q, Cn+Co]  sigmoid(logits)
                        out_ref):     # VMEM [2B, 4, Q]     rows = (x0, y0, x1, y1) * scale
    # Elementwise sigmoid over the merged logits stream (EUP path).
    scores_ref[...] = jax.nn.sigmoid(logits_ref[...])

    # cxcywh -> xyxy on the VPU: coordinate components live on sublane rows,
    # queries live on the lane axis, so this is just row reads / row writes.
    cx = boxes_ref[:, 0:1, :]            # [2B, 1, Q]
    cy = boxes_ref[:, 1:2, :]
    hw = 0.5 * boxes_ref[:, 2:3, :]
    hh = 0.5 * boxes_ref[:, 3:4, :]

    w_img = scale_ref[:, 0:1, :]         # [2B, 1, 1], broadcasts over Q lanes
    h_img = scale_ref[:, 1:2, :]

    out_ref[:, 0:1, :] = (cx - hw) * w_img
    out_ref[:, 1:2, :] = (cy - hh) * h_img
    out_ref[:, 2:3, :] = (cx + hw) * w_img
    out_ref[:, 3:4, :] = (cy + hh) * h_img


def post_process_hoi_triplet(outputs, target_sizes):
    nvi_logits = outputs['pred_nvi_logits']
    obj_logits = outputs['pred_obj_logits']
    inst_boxes = outputs['pred_inst_boxes']
    group_boxes = outputs['pred_group_boxes']

    B, Q, Cn = nvi_logits.shape
    Co = obj_logits.shape[-1]
    assert obj_logits.shape[0] == target_sizes.shape[0]
    assert target_sizes.shape[1] == 2

    # ---- layout plumbing (stream merging), not compute hoisting ------------
    # Logits: one lane-concatenated stream.
    logits_cat = jnp.concatenate(
        [nvi_logits, obj_logits], axis=-1).astype(jnp.float32)        # [B, Q, Cn+Co]
    # Boxes: stack inst/group on the batch axis, put Q on the lane axis.
    boxes_cat = jnp.concatenate(
        [inst_boxes, group_boxes], axis=0).astype(jnp.float32)        # [2B, Q, 4]
    boxes_t = jnp.transpose(boxes_cat, (0, 2, 1))                     # [2B, 4, Q]
    # Per-image scale (img_w, img_h), tiled for the inst/group stacking.
    ts = target_sizes.astype(jnp.float32)                             # [B, 2] = (h, w)
    wh = jnp.stack([ts[:, 1], ts[:, 0]], axis=-1)                     # [B, 2] = (w, h)
    scale = jnp.tile(wh, (2, 1))[:, :, None]                          # [2B, 2, 1]

    vmem = pl.BlockSpec(memory_space=pltpu.MemorySpace.VMEM)

    scores_cat, boxes_xyxy_t = pl.pallas_call(
        _postprocess_kernel,
        out_shape=(
            jax.ShapeDtypeStruct((B, Q, Cn + Co), jnp.float32),
            jax.ShapeDtypeStruct((2 * B, 4, Q), jnp.float32),
        ),
        in_specs=[vmem, vmem, vmem],
        out_specs=(vmem, vmem),
    )(logits_cat, boxes_t, scale)

    boxes_xyxy = jnp.transpose(boxes_xyxy_t, (0, 2, 1))               # [2B, Q, 4]

    # Single device->host transfer; per-image dicts are numpy views
    # (mirrors the torch module's `.to('cpu')` on every result tensor).
    scores_np, boxes_np = jax.device_get((scores_cat, boxes_xyxy))
    nvi_np = scores_np[..., :Cn]
    obj_np = scores_np[..., Cn:]
    inst_np = boxes_np[:B]
    grp_np = boxes_np[B:]
    ids = np.arange(Q, dtype=np.int32)

    results = []
    for index in range(B):
        results.append({
            'inst_boxes': inst_np[index],
            'group_boxes': grp_np[index],
            'nvi_scores': nvi_np[index],
            'obj_scores': obj_np[index],
            'inst_ids': ids,
            'group_ids': ids,
        })
    return results


def _reference(outputs, target_sizes):
    """Pure-JAX reference matching the PyTorch forward semantics."""
    obj_scores = jax.nn.sigmoid(outputs['pred_obj_logits'])
    nvi_scores = jax.nn.sigmoid(outputs['pred_nvi_logits'])
    h = target_sizes[:, 0].astype(jnp.float32)
    w = target_sizes[:, 1].astype(jnp.float32)
    scale = jnp.stack([w, h, w, h], axis=1)

    def cxcywh_to_xyxy(b):
        cx, cy, bw, bh = jnp.split(b, 4, axis=-1)
        return jnp.concatenate(
            [cx - 0.5 * bw, cy - 0.5 * bh, cx + 0.5 * bw, cy + 0.5 * bh], axis=-1)

    inst = cxcywh_to_xyxy(outputs['pred_inst_boxes']) * scale[:, None, :]
    grp = cxcywh_to_xyxy(outputs['pred_group_boxes']) * scale[:, None, :]
    return nvi_scores, obj_scores, inst, grp


if __name__ == "__main__":
    key = jax.random.PRNGKey(0)
    B, Q, Cn, Co = 2, 8, 6, 5  # batch, num_queries, nvi classes, obj classes
    k1, k2, k3, k4 = jax.random.split(key, 4)

    outputs = {
        'pred_nvi_logits': jax.random.normal(k1, (B, Q, Cn), jnp.float32),
        'pred_obj_logits': jax.random.normal(k2, (B, Q, Co), jnp.float32),
        # boxes in normalized cxcywh, as the model would produce
        'pred_inst_boxes': jax.random.uniform(k3, (B, Q, 4), jnp.float32,
                                              minval=0.1, maxval=0.9),
        'pred_group_boxes': jax.random.uniform(k4, (B, Q, 4), jnp.float32,
                                               minval=0.1, maxval=0.9),
    }
    target_sizes = jnp.array([[480, 640], [600, 800]], dtype=jnp.int32)  # (h, w)

    results = post_process_hoi_triplet(outputs, target_sizes)
    jax.block_until_ready(results)

    # Correctness check against the pure-JAX reference.
    ref_nvi, ref_obj, ref_inst, ref_grp = _reference(outputs, target_sizes)
    ref_nvi, ref_obj, ref_inst, ref_grp = jax.device_get(
        (ref_nvi, ref_obj, ref_inst, ref_grp))
    for i in range(B):
        assert np.allclose(results[i]['nvi_scores'], ref_nvi[i], atol=1e-5)
        assert np.allclose(results[i]['obj_scores'], ref_obj[i], atol=1e-5)
        assert np.allclose(results[i]['inst_boxes'], ref_inst[i], atol=1e-3)
        assert np.allclose(results[i]['group_boxes'], ref_grp[i], atol=1e-3)
        assert np.array_equal(results[i]['inst_ids'], np.arange(Q))
        assert np.array_equal(results[i]['group_ids'], np.arange(Q))

    print("KERNEL_OK")
</pallas_src>

<mosaic_0001>
module attributes {stable_mosaic.version = 11 : i64} {
  func.func @_postprocess_kernel(%arg0: memref<2x8x11xf32, #tpu.memory_space<vmem>>, %arg1: memref<4x4x8xf32, #tpu.memory_space<vmem>>, %arg2: memref<4x2x1xf32, #tpu.memory_space<vmem>>, %arg3: memref<2x8x11xf32, #tpu.memory_space<vmem>>, %arg4: memref<4x4x8xf32, #tpu.memory_space<vmem>>) attributes {dimension_semantics = [], scalar_prefetch = 0 : i64, scratch_operands = 0 : i64, tpu.core_type = #tpu.core_type<tc>} {
    %c0 = arith.constant 0 : index
    %c0_0 = arith.constant 0 : index
    %c0_1 = arith.constant 0 : index
    %0 = vector.load %arg0[%c0, %c0_0, %c0_1] : memref<2x8x11xf32, #tpu.memory_space<vmem>>, vector<2x8x11xf32>
    %1 = arith.negf %0 : vector<2x8x11xf32>
    %2 = math.exp %1 : vector<2x8x11xf32>
    %cst = arith.constant 1.000000e+00 : f32
    %3 = vector.broadcast %cst : f32 to vector<2x8x11xf32>
    %4 = arith.addf %3, %2 : vector<2x8x11xf32>
    %5 = arith.divf %3, %4 : vector<2x8x11xf32>
    %c0_2 = arith.constant 0 : index
    %c0_3 = arith.constant 0 : index
    %c0_4 = arith.constant 0 : index
    %6 = vector.load %arg3[%c0_2, %c0_3, %c0_4] : memref<2x8x11xf32, #tpu.memory_space<vmem>>, vector<2x8x11xf32>
    tpu.vector_store %arg3[%c0_2, %c0_3, %c0_4], %5 {strides = array<i32>} : memref<2x8x11xf32, #tpu.memory_space<vmem>>, vector<2x8x11xf32>,
    %c0_5 = arith.constant 0 : index
    %c0_6 = arith.constant 0 : index
    %c0_7 = arith.constant 0 : index
    %7 = vector.load %arg1[%c0_5, %c0_6, %c0_7] : memref<4x4x8xf32, #tpu.memory_space<vmem>>, vector<4x1x8xf32>
    %c0_8 = arith.constant 0 : index
    %c1 = arith.constant 1 : index
    %c0_9 = arith.constant 0 : index
    %8 = vector.load %arg1[%c0_8, %c1, %c0_9] : memref<4x4x8xf32, #tpu.memory_space<vmem>>, vector<4x1x8xf32>
    %c0_10 = arith.constant 0 : index
    %c2 = arith.constant 2 : index
    %c0_11 = arith.constant 0 : index
    %9 = vector.load %arg1[%c0_10, %c2, %c0_11] : memref<4x4x8xf32, #tpu.memory_space<vmem>>, vector<4x1x8xf32>
    %cst_12 = arith.constant 5.000000e-01 : f32
    %10 = vector.broadcast %cst_12 : f32 to vector<4x1x8xf32>
    %11 = arith.mulf %10, %9 : vector<4x1x8xf32>
    %c0_13 = arith.constant 0 : index
    %c3 = arith.constant 3 : index
    %c0_14 = arith.constant 0 : index
    %12 = vector.load %arg1[%c0_13, %c3, %c0_14] : memref<4x4x8xf32, #tpu.memory_space<vmem>>, vector<4x1x8xf32>
    %cst_15 = arith.constant 5.000000e-01 : f32
    %13 = vector.broadcast %cst_15 : f32 to vector<4x1x8xf32>
    %14 = arith.mulf %13, %12 : vector<4x1x8xf32>
    %c0_16 = arith.constant 0 : index
    %c0_17 = arith.constant 0 : index
    %c0_18 = arith.constant 0 : index
    %15 = vector.load %arg2[%c0_16, %c0_17, %c0_18] : memref<4x2x1xf32, #tpu.memory_space<vmem>>, vector<4x1x1xf32>
    %c0_19 = arith.constant 0 : index
    %c1_20 = arith.constant 1 : index
    %c0_21 = arith.constant 0 : index
    %16 = vector.load %arg2[%c0_19, %c1_20, %c0_21] : memref<4x2x1xf32, #tpu.memory_space<vmem>>, vector<4x1x1xf32>
    %17 = arith.subf %7, %11 : vector<4x1x8xf32>
    %18 = vector.broadcast %15 : vector<4x1x1xf32> to vector<4x1x8xf32>
    %19 = arith.mulf %17, %18 : vector<4x1x8xf32>
    %c0_22 = arith.constant 0 : index
    %c0_23 = arith.constant 0 : index
    %c0_24 = arith.constant 0 : index
    %20 = vector.load %arg4[%c0_22, %c0_23, %c0_24] : memref<4x4x8xf32, #tpu.memory_space<vmem>>, vector<4x1x8xf32>
    tpu.vector_store %arg4[%c0_22, %c0_23, %c0_24], %19 {strides = array<i32>} : memref<4x4x8xf32, #tpu.memory_space<vmem>>, vector<4x1x8xf32>,
    %21 = arith.subf %8, %14 : vector<4x1x8xf32>
    %22 = vector.broadcast %16 : vector<4x1x1xf32> to vector<4x1x8xf32>
    %23 = arith.mulf %21, %22 : vector<4x1x8xf32>
    %c0_25 = arith.constant 0 : index
    %c1_26 = arith.constant 1 : index
    %c0_27 = arith.constant 0 : index
    %24 = vector.load %arg4[%c0_25, %c1_26, %c0_27] : memref<4x4x8xf32, #tpu.memory_space<vmem>>, vector<4x1x8xf32>
    tpu.vector_store %arg4[%c0_25, %c1_26, %c0_27], %23 {strides = array<i32>} : memref<4x4x8xf32, #tpu.memory_space<vmem>>, vector<4x1x8xf32>,
    %25 = arith.addf %7, %11 : vector<4x1x8xf32>
    %26 = vector.broadcast %15 : vector<4x1x1xf32> to vector<4x1x8xf32>
    %27 = arith.mulf %25, %26 : vector<4x1x8xf32>
    %c0_28 = arith.constant 0 : index
    %c2_29 = arith.constant 2 : index
    %c0_30 = arith.constant 0 : index
    %28 = vector.load %arg4[%c0_28, %c2_29, %c0_30] : memref<4x4x8xf32, #tpu.memory_space<vmem>>, vector<4x1x8xf32>
    tpu.vector_store %arg4[%c0_28, %c2_29, %c0_30], %27 {strides = array<i32>} : memref<4x4x8xf32, #tpu.memory_space<vmem>>, vector<4x1x8xf32>,
    %29 = arith.addf %8, %14 : vector<4x1x8xf32>
    %30 = vector.broadcast %16 : vector<4x1x1xf32> to vector<4x1x8xf32>
    %31 = arith.mulf %29, %30 : vector<4x1x8xf32>
    %c0_31 = arith.constant 0 : index
    %c3_32 = arith.constant 3 : index
    %c0_33 = arith.constant 0 : index
    %32 = vector.load %arg4[%c0_31, %c3_32, %c0_33] : memref<4x4x8xf32, #tpu.memory_space<vmem>>, vector<4x1x8xf32>
    tpu.vector_store %arg4[%c0_31, %c3_32, %c0_33], %31 {strides = array<i32>} : memref<4x4x8xf32, #tpu.memory_space<vmem>>, vector<4x1x8xf32>,
    return
  }
}

</mosaic_0001>

<llo_original>
// kernel: tpu_custom_call.1
$region0: #{tpu_custom_call.1}
  #allocation0 [shape = 'u32[]', space=smem, size = 0x4, offset = 0x4, fixed_abs, tag = 'smem constant byte address 0x4 - core index']
  #allocation1 [shape = 'u32[144,128]{1,0:T(1,128)}', space=vmem, size = 0x12000, scoped, tag = 'internal scratch']
  %s0 = inlined_call_operand.hbm [shape: f32[2,8,11], index: 0, kind: input, shape index: {}]
  %s1 = inlined_call_operand.hbm [shape: f32[4,4,8], index: 1, kind: input, shape index: {}]
  %s2 = inlined_call_operand.vmem [shape: f32[4,2,1], index: 2, kind: input, shape index: {}]
  %s3 = inlined_call_operand.hbm [shape: f32[2,8,11], index: 3, kind: output, shape index: {0}]
  %s4 = inlined_call_operand.hbm [shape: f32[4,4,8], index: 4, kind: output, shape index: {1}]
  %5 = xla_tuple %s3, %s4
  %s6 = sld [smem:[#allocation0]]
  $region38: #{tpu_custom_call.1} parent=0
    _
  %s8 = ssub.s32 1, %s6
  %s9 = scalar_select 0, %s8, %s6
  $region1: #{tpu_custom_call.1} parent=0
    #allocation2 [shape = 'u8[8192]{0}', space=vmem, size = 0x2000, scoped, tag = 'input window, operand 0, single buffered']
    #allocation3 [shape = 's32[1]{0}', space=sflag, size = 0x4, scoped, tag = 'scoped memory for tpu_custom_call.1']
    #allocation4 [shape = 's32[1]{0}', space=sflag, size = 0x4, scoped, tag = 'scoped memory for tpu_custom_call.1']
    #allocation5 [shape = 'u8[8192]{0}', space=vmem, size = 0x2000, scoped, tag = 'input window, operand 1, single buffered']
    #allocation6 [shape = 's32[1]{0}', space=sflag, size = 0x4, scoped, tag = 'scoped memory for tpu_custom_call.1']
    #allocation7 [shape = 'u8[8192]{0}', space=vmem, size = 0x2000, scoped, tag = 'output window, operand 0, single buffered']
    #allocation8 [shape = 'u8[8192]{0}', space=vmem, size = 0x2000, scoped, tag = 'output window, operand 1, single buffered']
    #allocation9 [shape = 's32[1]{0}', space=sflag, size = 0x4, scoped, tag = 'scoped memory for tpu_custom_call.1']
    %10 = vsyncpa [#allocation3], 0
    %11 = vsyncpa [#allocation6], 0
    %12 = vsyncpa [#allocation4], 0
    %13 = vsyncpa [#allocation9], 0
    // Predicated region
    $region2: #{tpu_custom_call.1} parent=1 // pred_check
      _
    $region3: #{tpu_custom_call.1} parent=1 // pred_check_branch
      %15 = sbr.rel (0) target = $region5
    $region4: #{tpu_custom_call.1} parent=1 // pred_region
      %s17 = ssub.s32 256, 256
      %18 = vsyncadd [#allocation3], %s17
      %s19 = sshll.u32 [#allocation2], 4
      %s20 = int_to_ptr.vmem [resolvable:$true] %s19
      %25 = dma.hbm_to_vmem [thread:$0]  %s0, 256, %s20, [#allocation3], 128, 128, 8
    $region5: #{tpu_custom_call.1} parent=1 // pred_fallthru
      _
    // Predicated region
    $region6: #{tpu_custom_call.1} parent=1 // pred_check
      _
    $region7: #{tpu_custom_call.1} parent=1 // pred_check_branch
      %27 = sbr.rel (0) target = $region9
    $region8: #{tpu_custom_call.1} parent=1 // pred_region
      %s29 = ssub.s32 256, 256
      %30 = vsyncadd [#allocation6], %s29
      %s31 = sshll.u32 [#allocation5], 4
      %s32 = int_to_ptr.vmem [resolvable:$true] %s31
      %37 = dma.hbm_to_vmem [thread:$0]  %s1, 256, %s32, [#allocation6], 64, 64, 4
    $region9: #{tpu_custom_call.1} parent=1 // pred_fallthru
      _
    // Predicated region
    $region10: #{tpu_custom_call.1} parent=1 // pred_check
      _
    $region11: #{tpu_custom_call.1} parent=1 // pred_check_branch
      %39 = sbr.rel (0) target = $region13
    $region12: #{tpu_custom_call.1} parent=1 // pred_region
      _
    $region13: #{tpu_custom_call.1} parent=1 // pred_fallthru
      _
    // Predicated region
    $region14: #{tpu_custom_call.1} parent=1 // pred_check
      _
    $region15: #{tpu_custom_call.1} parent=1 // pred_check_branch
      %41 = sbr.rel (0) target = $region17
    $region16: #{tpu_custom_call.1} parent=1 // pred_region
      %42 = dma.done [#allocation3], 256
    $region17: #{tpu_custom_call.1} parent=1 // pred_fallthru
      _
    // Predicated region
    $region18: #{tpu_custom_call.1} parent=1 // pred_check
      _
    $region19: #{tpu_custom_call.1} parent=1 // pred_check_branch
      %44 = sbr.rel (0) target = $region21
    $region20: #{tpu_custom_call.1} parent=1 // pred_region
      %45 = dma.done [#allocation6], 256
    $region21: #{tpu_custom_call.1} parent=1 // pred_fallthru
      _
    %v46 = vld [vmem:[#allocation2] sm:$0xff]
    %v47 = vld [vmem:[#allocation2 + $0x8] sm:$0xff]
    %v48 = vxor.u32 %v46, 2147483648
    %v49 = vxor.u32 %v47, 2147483648
    %v50 = vmul.f32 %v48, 1.442695
    %v51 = vpow.pop %v50
    %v52 = vmul.f32 %v49, 1.442695
    %v53 = vpow.pop %v52
    %v54 = vadd.f32 %v51, 1.0
    %v55 = vadd.f32 %v53, 1.0
    %v56 = vrcp.pop %v54
    %v57 = vmul.f32 1.0, %v56
    %v58 = vrcp.pop %v55
    %v59 = vmul.f32 1.0, %v58
    %vm60 = vcmask 89088
    %61 = vst.msk [vmem:[#allocation7] sm:$0xff] %vm60, %v57
    %62 = vst.msk [vmem:[#allocation7 + $0x8] sm:$0xff] %vm60, %v59
    %v63 = vld [vmem:[#allocation5] sm:$0x1]
    %v64 = vld [vmem:[#allocation5 + $0x4] sm:$0x1]
    %v65 = vld [vmem:[#allocation5 + $0x8] sm:$0x1]
    %v66 = vld [vmem:[#allocation5 + $0xc] sm:$0x1]
    %v67 = vld [vmem:[#allocation5 + $0x1] sm:$0x1]
    %v68 = vld [vmem:[#allocation5 + $0x5] sm:$0x1]
    %v69 = vld [vmem:[#allocation5 + $0x9] sm:$0x1]
    %v70 = vld [vmem:[#allocation5 + $0xd] sm:$0x1]
    %v71 = vld [vmem:[#allocation5 + $0x2] sm:$0x1]
    %v72 = vld [vmem:[#allocation5 + $0x6] sm:$0x1]
    %v73 = vld [vmem:[#allocation5 + $0xa] sm:$0x1]
    %v74 = vld [vmem:[#allocation5 + $0xe] sm:$0x1]
    %v75 = vmul.f32 %v71, 0.5
    %v76 = vmul.f32 %v72, 0.5
    %v77 = vmul.f32 %v73, 0.5
    %v78 = vmul.f32 %v74, 0.5
    %v79 = vld [vmem:[#allocation5 + $0x3] sm:$0x1]
    %v80 = vld [vmem:[#allocation5 + $0x7] sm:$0x1]
    %v81 = vld [vmem:[#allocation5 + $0xb] sm:$0x1]
    %v82 = vld [vmem:[#allocation5 + $0xf] sm:$0x1]
    %v83 = vmul.f32 %v79, 0.5
    %v84 = vmul.f32 %v80, 0.5
    %v85 = vmul.f32 %v81, 0.5
    %v86 = vmul.f32 %v82, 0.5
    %v87 = vld [vmem:[%s2] sm:$0x1]
    %v88 = vld [vmem:[%s2 + $0x2] sm:$0x1]
    %v89 = vld [vmem:[%s2 + $0x4] sm:$0x1]
    %v90 = vld [vmem:[%s2 + $0x6] sm:$0x1]
    %v91 = vld [vmem:[%s2 + $0x1] sm:$0x1]
    %v92 = vld [vmem:[%s2 + $0x3] sm:$0x1]
    %v93 = vld [vmem:[%s2 + $0x5] sm:$0x1]
    %v94 = vld [vmem:[%s2 + $0x7] sm:$0x1]
    %v95 = vsub.f32 %v63, %v75
    %v96 = vsub.f32 %v64, %v76
    %v97 = vsub.f32 %v65, %v77
    %v98 = vsub.f32 %v66, %v78
    %100 = vset.pattern.permute.xlu0 0
    %101 = vperm.xlu0 %100, %v87
    %v102 = vpop.permute.xlu0 %101
    %105 = vset.pattern.permute.xlu0 0
    %106 = vperm.xlu0 %105, %v88
    %v107 = vpop.permute.xlu0 %106
    %110 = vset.pattern.permute.xlu0 0
    %111 = vperm.xlu0 %110, %v89
    %v112 = vpop.permute.xlu0 %111
    %115 = vset.pattern.permute.xlu0 0
    %116 = vperm.xlu0 %115, %v90
    %v117 = vpop.permute.xlu0 %116
    %v119 = vmul.f32 %v95, %v102
    %v120 = vmul.f32 %v96, %v107
    %v121 = vmul.f32 %v97, %v112
    %v122 = vmul.f32 %v98, %v117
    %vm123 = vcmask 57344
    %124 = vst.msk [vmem:[#allocation8] sm:$0x1] %vm123, %v119
    %125 = vst.msk [vmem:[#allocation8 + $0x4] sm:$0x1] %vm123, %v120
    %126 = vst.msk [vmem:[#allocation8 + $0x8] sm:$0x1] %vm123, %v121
    %127 = vst.msk [vmem:[#allocation8 + $0xc] sm:$0x1] %vm123, %v122
    %v128 = vsub.f32 %v67, %v83
    %v129 = vsub.f32 %v68, %v84
    %v130 = vsub.f32 %v69, %v85
    %v131 = vsub.f32 %v70, %v86
    %133 = vset.pattern.permute.xlu0 0
    %134 = vperm.xlu0 %133, %v91
    %v135 = vpop.permute.xlu0 %134
    %138 = vset.pattern.permute.xlu0 0
    %139 = vperm.xlu0 %138, %v92
    %v140 = vpop.permute.xlu0 %139
    %143 = vset.pattern.permute.xlu0 0
    %144 = vperm.xlu0 %143, %v93
    %v145 = vpop.permute.xlu0 %144
    %148 = vset.pattern.permute.xlu0 0
    %149 = vperm.xlu0 %148, %v94
    %v150 = vpop.permute.xlu0 %149
    %v152 = vmul.f32 %v128, %v135
    %v153 = vmul.f32 %v129, %v140
    %v154 = vmul.f32 %v130, %v145
    %v155 = vmul.f32 %v131, %v150
    %156 = vst.msk [vmem:[#allocation8 + $0x1] sm:$0x1] %vm123, %v152
    %157 = vst.msk [vmem:[#allocation8 + $0x5] sm:$0x1] %vm123, %v153
    %158 = vst.msk [vmem:[#allocation8 + $0x9] sm:$0x1] %vm123, %v154
    %159 = vst.msk [vmem:[#allocation8 + $0xd] sm:$0x1] %vm123, %v155
    %v160 = vadd.f32 %v63, %v75
    %v161 = vadd.f32 %v64, %v76
    %v162 = vadd.f32 %v65, %v77
    %v163 = vadd.f32 %v66, %v78
    %v164 = vmul.f32 %v160, %v102
    %v165 = vmul.f32 %v161, %v107
    %v166 = vmul.f32 %v162, %v112
    %v167 = vmul.f32 %v163, %v117
    %168 = vst.msk [vmem:[#allocation8 + $0x2] sm:$0x1] %vm123, %v164
    %169 = vst.msk [vmem:[#allocation8 + $0x6] sm:$0x1] %vm123, %v165
    %170 = vst.msk [vmem:[#allocation8 + $0xa] sm:$0x1] %vm123, %v166
    %171 = vst.msk [vmem:[#allocation8 + $0xe] sm:$0x1] %vm123, %v167
    %v172 = vadd.f32 %v67, %v83
    %v173 = vadd.f32 %v68, %v84
    %v174 = vadd.f32 %v69, %v85
    %v175 = vadd.f32 %v70, %v86
    %v176 = vmul.f32 %v172, %v135
    %v177 = vmul.f32 %v173, %v140
    %v178 = vmul.f32 %v174, %v145
    %v179 = vmul.f32 %v175, %v150
    %180 = vst.msk [vmem:[#allocation8 + $0x3] sm:$0x1] %vm123, %v176
    %181 = vst.msk [vmem:[#allocation8 + $0x7] sm:$0x1] %vm123, %v177
    %182 = vst.msk [vmem:[#allocation8 + $0xb] sm:$0x1] %vm123, %v178
    %183 = vst.msk [vmem:[#allocation8 + $0xf] sm:$0x1] %vm123, %v179
    // Predicated region
    $region22: #{tpu_custom_call.1} parent=1 // pred_check
      _
    $region23: #{tpu_custom_call.1} parent=1 // pred_check_branch
      %185 = sbr.rel (0) target = $region25
    $region24: #{tpu_custom_call.1} parent=1 // pred_region
      %s187 = ssub.s32 256, 256
      %188 = vsyncadd [#allocation4], %s187
      %s189 = sshll.u32 [#allocation7], 4
      %s190 = int_to_ptr.vmem [resolvable:$true] %s189
      %195 = dma.vmem_to_hbm [thread:$0]  %s190, 256, %s3, [#allocation4], 128, 128, 8
    $region25: #{tpu_custom_call.1} parent=1 // pred_fallthru
      _
    // Predicated region
    $region26: #{tpu_custom_call.1} parent=1 // pred_check
      _
    $region27: #{tpu_custom_call.1} parent=1 // pred_check_branch
      %197 = sbr.rel (0) target = $region29
    $region28: #{tpu_custom_call.1} parent=1 // pred_region
      %s199 = ssub.s32 256, 256
      %200 = vsyncadd [#allocation9], %s199
      %s201 = sshll.u32 [#allocation8], 4
      %s202 = int_to_ptr.vmem [resolvable:$true] %s201
      %207 = dma.vmem_to_hbm [thread:$0]  %s202, 256, %s4, [#allocation9], 64, 64, 4
    $region29: #{tpu_custom_call.1} parent=1 // pred_fallthru
      _
    // Predicated region
    $region30: #{tpu_custom_call.1} parent=1 // pred_check
      _
    $region31: #{tpu_custom_call.1} parent=1 // pred_check_branch
      %209 = sbr.rel (0) target = $region33
    $region32: #{tpu_custom_call.1} parent=1 // pred_region
      %210 = dma.done [#allocation4], 256
    $region33: #{tpu_custom_call.1} parent=1 // pred_fallthru
      _
    // Predicated region
    $region34: #{tpu_custom_call.1} parent=1 // pred_check
      _
    $region35: #{tpu_custom_call.1} parent=1 // pred_check_branch
      %212 = sbr.rel (0) target = $region37
    $region36: #{tpu_custom_call.1} parent=1 // pred_region
      %213 = dma.done [#allocation9], 256
    $region37: #{tpu_custom_call.1} parent=1 // pred_fallthru
      _
    %214 = vsyncpa [#allocation3], 1
    %215 = vsyncpa [#allocation6], 1
    %216 = vsyncpa [#allocation4], 1
    %217 = vsyncpa [#allocation9], 1

</llo_original>
